<compile_context>
chip_gen: v7x
topology: tpu7x:2x2x1
jax: 0.10.0
libtpu: 0.0.40
codegen_flags: <defaults>
</compile_context>

<pallas_src>
import functools

import jax
import jax.numpy as jnp
from jax.experimental import pallas as pl
from jax.experimental.pallas import tpu as pltpu


# ----------------------------------------------------------------------------
# Kernels
# ----------------------------------------------------------------------------
def _channel_mix_vpu_dense_kernel(w_ref, b_ref, x_ref, o_ref, *,
                                  index, c_in, c_out):
    """Small-channel path, sublane-dense VPU FMAs, shared bank in SMEM.

    w_ref: (num_sub*c_out*c_in,) SMEM (flattened shared weight bank)
    b_ref: (num_sub*c_out,)      SMEM (flattened shared bias bank)
    x_ref: (1, c_in,  R, 128) VMEM
    o_ref: (1, c_out, R, 128) VMEM
    """
    w_base = index * c_out * c_in
    b_base = index * c_out
    # Load each input-channel slab once; each is a dense (R, 128) tile.
    xs = [x_ref[0, ci].astype(jnp.float32) for ci in range(c_in)]
    for co in range(c_out):                              # fully unrolled (static)
        acc = xs[0] * w_ref[w_base + co * c_in]
        for ci in range(1, c_in):
            acc = acc + xs[ci] * w_ref[w_base + co * c_in + ci]
        # Per-channel direct store: plain dense vst, short live ranges.
        o_ref[0, co] = (acc + b_ref[b_base + co]).astype(o_ref.dtype)


def _channel_mix_vpu_lanes_kernel(w_ref, b_ref, x_ref, o_ref, *,
                                  index, c_in, c_out):
    """Fallback for hw % 128 != 0: lane-dense 3D layout, VPU FMAs.

    w_ref: (num_sub*c_out*c_in,) SMEM   b_ref: (num_sub*c_out,) SMEM
    x_ref: (1, c_in, T) VMEM            o_ref: (1, c_out, T) VMEM
    """
    w_base = index * c_out * c_in
    b_base = index * c_out
    x = x_ref[0].astype(jnp.float32)                     # (c_in, T)
    for co in range(c_out):
        acc = x[0:1, :] * w_ref[w_base + co * c_in]
        for ci in range(1, c_in):
            acc = acc + x[ci:ci + 1, :] * w_ref[w_base + co * c_in + ci]
        o_ref[0, co:co + 1, :] = (acc + b_ref[b_base + co]).astype(o_ref.dtype)


def _channel_mix_mxu_kernel(w_ref, b_ref, x_ref, o_ref):
    """Large-channel path: lane-dense MXU matmul, weight block resident.

    w_ref: (1, C_out, C_in) VMEM (constant index_map -> stays resident)
    b_ref: (1, C_out, 1)    VMEM
    x_ref: (1, C_in, T)     VMEM
    o_ref: (1, C_out, T)    VMEM
    """
    acc = jnp.dot(w_ref[0], x_ref[0], preferred_element_type=jnp.float32)
    o_ref[0] = (acc + b_ref[0].astype(jnp.float32)).astype(o_ref.dtype)


# ----------------------------------------------------------------------------
# Wrapper: SubModule.forward(x) == main_module.forward(x, indices)
# ----------------------------------------------------------------------------
def sub_module_forward(x_nchw, weight_bank, bias_bank, index, *,
                       vmem_block_budget_bytes=16 * 1024 * 1024,
                       vmem_limit_bytes=32 * 1024 * 1024,
                       vpu_channel_threshold=16):
    """Apply the `index`-th shared weight of the joint module to x.

    x_nchw      : (B, C_in, H, W)
    weight_bank : (num_sub, C_out, C_in)   shared nn.Parameter bank
    bias_bank   : (num_sub, C_out)
    index       : python int — the SubModule's `indices`
    """
    B, C_in, H, W = x_nchw.shape
    num_sub, C_out, C_in_w = weight_bank.shape
    assert C_in_w == C_in
    assert 0 <= index < num_sub
    index = int(index)  # static; TODO(synk): use scalar prefetch for a traced index

    hw = H * W
    itemsize = jnp.dtype(x_nchw.dtype).itemsize
    use_vpu = max(C_in, C_out) <= vpu_channel_threshold

    compiler_params = pltpu.CompilerParams(
        dimension_semantics=("parallel", "parallel"),
        vmem_limit_bytes=vmem_limit_bytes,
    )

    # ------------------------------------------------------------------ #
    # Main path: small channels, hw divisible by 128 -> sublane-dense VPU #
    # ------------------------------------------------------------------ #
    if use_vpu and hw % 128 == 0:
        rows = hw // 128
        # Byte-budgeted tiles: Pallas double-buffers the in and out blocks,
        # so 2*(in_block + out_block) must fit the budget (no sublane-padding
        # penalty in this layout — (R,128) is the native tile).
        bytes_per_row = (C_in + C_out) * 128 * itemsize
        r_budget = max(8, vmem_block_budget_bytes // (2 * bytes_per_row))
        # Bound the static unroll (c_out*c_in slab-FMAs of r_tile/8 vregs each).
        r_unroll = max(8, (8 * 8192) // max(1, C_in * C_out))
        r_tile = min(rows, r_budget, r_unroll)
        if r_tile < rows:
            r_tile = max(8, (r_tile // 8) * 8)   # multiple of 8; ragged tail OK
        num_tiles = pl.cdiv(rows, r_tile)

        x4 = x_nchw.reshape(B, C_in, rows, 128)          # free reshape
        kernel = functools.partial(_channel_mix_vpu_dense_kernel,
                                   index=index, c_in=C_in, c_out=C_out)
        out4 = pl.pallas_call(
            kernel,
            out_shape=jax.ShapeDtypeStruct((B, C_out, rows, 128), x_nchw.dtype),
            grid_spec=pltpu.PrefetchScalarGridSpec(
                num_scalar_prefetch=0,
                grid=(num_tiles, B),     # spatial tiles first (megacore balance)
                in_specs=[
                    pl.BlockSpec(memory_space=pltpu.MemorySpace.SMEM),  # w bank
                    pl.BlockSpec(memory_space=pltpu.MemorySpace.SMEM),  # b bank
                    pl.BlockSpec((1, C_in, r_tile, 128),
                                 lambda ti, bi: (bi, 0, ti, 0)),
                ],
                out_specs=pl.BlockSpec((1, C_out, r_tile, 128),
                                       lambda ti, bi: (bi, 0, ti, 0)),
            ),
            compiler_params=compiler_params,
        )(weight_bank.reshape(-1), bias_bank.reshape(-1), x4)
        return out4.reshape(B, C_out, H, W)              # free reshape

    # ------------------------------------------------------------------ #
    # Fallback paths: ragged hw (lane-dense 3D VPU) or large channels MXU #
    # ------------------------------------------------------------------ #
    x3 = x_nchw.reshape(B, C_in, hw)                     # free reshape
    pad8 = lambda c: -(-c // 8) * 8                      # sublane padding in VMEM
    bytes_per_lane = (pad8(C_in) + pad8(C_out)) * itemsize
    t_budget = max(128, vmem_block_budget_bytes // (2 * bytes_per_lane))
    if t_budget >= hw:
        tile_hw = hw                                     # full extent (always legal)
    else:
        tile_hw = max(128, (t_budget // 128) * 128)      # ragged tail -> partial blocks
    num_tiles = pl.cdiv(hw, tile_hw)

    if use_vpu:
        kernel = functools.partial(_channel_mix_vpu_lanes_kernel,
                                   index=index, c_in=C_in, c_out=C_out)
        w_arg = weight_bank.reshape(-1)
        b_arg = bias_bank.reshape(-1)
        w_spec = pl.BlockSpec(memory_space=pltpu.MemorySpace.SMEM)
        b_spec = pl.BlockSpec(memory_space=pltpu.MemorySpace.SMEM)
    else:
        kernel = _channel_mix_mxu_kernel
        w_arg = weight_bank                              # (num_sub, C_out, C_in)
        b_arg = bias_bank.reshape(num_sub, C_out, 1)
        # Select the sub-module block via a constant index_map -> stays resident.
        w_spec = pl.BlockSpec((1, C_out, C_in), lambda ti, bi: (index, 0, 0))
        b_spec = pl.BlockSpec((1, C_out, 1), lambda ti, bi: (index, 0, 0))

    out3 = pl.pallas_call(
        kernel,
        out_shape=jax.ShapeDtypeStruct((B, C_out, hw), x_nchw.dtype),
        grid_spec=pltpu.PrefetchScalarGridSpec(
            num_scalar_prefetch=0,
            grid=(num_tiles, B),
            in_specs=[w_spec, b_spec,
                      pl.BlockSpec((1, C_in, tile_hw),
                                   lambda ti, bi: (bi, 0, ti))],
            out_specs=pl.BlockSpec((1, C_out, tile_hw),
                                   lambda ti, bi: (bi, 0, ti)),
        ),
        compiler_params=compiler_params,
    )(w_arg, b_arg, x3)
    return out3.reshape(B, C_out, H, W)


# ----------------------------------------------------------------------------
# Reference (plain JAX) for correctness check
# ----------------------------------------------------------------------------
def sub_module_forward_ref(x_nchw, weight_bank, bias_bank, index):
    w = weight_bank[index]                               # (C_out, C_in)
    b = bias_bank[index]                                 # (C_out,)
    return jnp.einsum("bchw,oc->bohw", x_nchw, w) + b[None, :, None, None]


if __name__ == "__main__":
    key = jax.random.PRNGKey(0)
    k_x, k_w, k_b = jax.random.split(key, 3)

    B, C_in, C_out, H, W = 2, 4, 4, 16, 16
    num_sub = 3
    index = 1   # this SubModule's `indices`

    x = jax.random.normal(k_x, (B, C_in, H, W), dtype=jnp.float32)
    # deterministic "shared" parameter bank of the joint (main) module
    weight_bank = jax.random.normal(k_w, (num_sub, C_out, C_in),
                                    dtype=jnp.float32) * 0.1
    bias_bank = jax.random.normal(k_b, (num_sub, C_out), dtype=jnp.float32) * 0.1

    out = sub_module_forward(x, weight_bank, bias_bank, index)
    out = jax.block_until_ready(out)

    ref = sub_module_forward_ref(x, weight_bank, bias_bank, index)
    assert out.shape == (B, C_out, H, W)
    assert jnp.allclose(out, ref, atol=1e-5, rtol=1e-5), "mismatch vs reference"

    print("KERNEL_OK")
</pallas_src>

<mosaic_0001>
module attributes {stable_mosaic.version = 11 : i64} {
  func.func @_channel_mix_vpu_dense_kernel(%arg0: i32, %arg1: i32, %arg2: memref<48xf32, #tpu.memory_space<smem>>, %arg3: memref<12xf32, #tpu.memory_space<smem>>, %arg4: memref<1x4x2x128xf32, #tpu.memory_space<vmem>>, %arg5: memref<1x4x2x128xf32, #tpu.memory_space<vmem>>) attributes {dimension_semantics = [#tpu.dimension_semantics<parallel>, #tpu.dimension_semantics<parallel>], iteration_bounds = array<i64: 1, 2>, scalar_prefetch = 0 : i64, scratch_operands = 0 : i64, tpu.core_type = #tpu.core_type<tc>, window_params = [{transform_indices = @transform_0, window_bounds = array<i64: 48>}, {transform_indices = @transform_1, window_bounds = array<i64: 12>}, {transform_indices = @transform_2, window_bounds = array<i64: 1, 4, 2, 128>}, {transform_indices = @transform_3, window_bounds = array<i64: 1, 4, 2, 128>}]} {
    %c0 = arith.constant 0 : index
    %c0_0 = arith.constant 0 : index
    %c0_1 = arith.constant 0 : index
    %c0_2 = arith.constant 0 : index
    %0 = vector.load %arg4[%c0, %c0_0, %c0_1, %c0_2] : memref<1x4x2x128xf32, #tpu.memory_space<vmem>>, vector<1x1x2x128xf32>
    %1 = vector.shape_cast %0 : vector<1x1x2x128xf32> to vector<2x128xf32>
    %c0_3 = arith.constant 0 : index
    %c1 = arith.constant 1 : index
    %c0_4 = arith.constant 0 : index
    %c0_5 = arith.constant 0 : index
    %2 = vector.load %arg4[%c0_3, %c1, %c0_4, %c0_5] : memref<1x4x2x128xf32, #tpu.memory_space<vmem>>, vector<1x1x2x128xf32>
    %3 = vector.shape_cast %2 : vector<1x1x2x128xf32> to vector<2x128xf32>
    %c0_6 = arith.constant 0 : index
    %c2 = arith.constant 2 : index
    %c0_7 = arith.constant 0 : index
    %c0_8 = arith.constant 0 : index
    %4 = vector.load %arg4[%c0_6, %c2, %c0_7, %c0_8] : memref<1x4x2x128xf32, #tpu.memory_space<vmem>>, vector<1x1x2x128xf32>
    %5 = vector.shape_cast %4 : vector<1x1x2x128xf32> to vector<2x128xf32>
    %c0_9 = arith.constant 0 : index
    %c3 = arith.constant 3 : index
    %c0_10 = arith.constant 0 : index
    %c0_11 = arith.constant 0 : index
    %6 = vector.load %arg4[%c0_9, %c3, %c0_10, %c0_11] : memref<1x4x2x128xf32, #tpu.memory_space<vmem>>, vector<1x1x2x128xf32>
    %7 = vector.shape_cast %6 : vector<1x1x2x128xf32> to vector<2x128xf32>
    %c16 = arith.constant 16 : index
    %8 = memref.load %arg2[%c16] : memref<48xf32, #tpu.memory_space<smem>>
    %9 = vector.broadcast %8 : f32 to vector<2x128xf32>
    %10 = arith.mulf %1, %9 : vector<2x128xf32>
    %c17 = arith.constant 17 : index
    %11 = memref.load %arg2[%c17] : memref<48xf32, #tpu.memory_space<smem>>
    %12 = vector.broadcast %11 : f32 to vector<2x128xf32>
    %13 = arith.mulf %3, %12 : vector<2x128xf32>
    %14 = arith.addf %10, %13 : vector<2x128xf32>
    %c18 = arith.constant 18 : index
    %15 = memref.load %arg2[%c18] : memref<48xf32, #tpu.memory_space<smem>>
    %16 = vector.broadcast %15 : f32 to vector<2x128xf32>
    %17 = arith.mulf %5, %16 : vector<2x128xf32>
    %18 = arith.addf %14, %17 : vector<2x128xf32>
    %c19 = arith.constant 19 : index
    %19 = memref.load %arg2[%c19] : memref<48xf32, #tpu.memory_space<smem>>
    %20 = vector.broadcast %19 : f32 to vector<2x128xf32>
    %21 = arith.mulf %7, %20 : vector<2x128xf32>
    %22 = arith.addf %18, %21 : vector<2x128xf32>
    %c4 = arith.constant 4 : index
    %23 = memref.load %arg3[%c4] : memref<12xf32, #tpu.memory_space<smem>>
    %24 = vector.broadcast %23 : f32 to vector<2x128xf32>
    %25 = arith.addf %22, %24 : vector<2x128xf32>
    %c0_12 = arith.constant 0 : index
    %c0_13 = arith.constant 0 : index
    %c0_14 = arith.constant 0 : index
    %c0_15 = arith.constant 0 : index
    %26 = vector.load %arg5[%c0_12, %c0_13, %c0_14, %c0_15] : memref<1x4x2x128xf32, #tpu.memory_space<vmem>>, vector<1x1x2x128xf32>
    %27 = vector.shape_cast %26 : vector<1x1x2x128xf32> to vector<2x128xf32>
    %28 = vector.shape_cast %25 : vector<2x128xf32> to vector<1x1x2x128xf32>
    tpu.vector_store %arg5[%c0_12, %c0_13, %c0_14, %c0_15], %28 {strides = array<i32>} : memref<1x4x2x128xf32, #tpu.memory_space<vmem>>, vector<1x1x2x128xf32>,
    %c20 = arith.constant 20 : index
    %29 = memref.load %arg2[%c20] : memref<48xf32, #tpu.memory_space<smem>>
    %30 = vector.broadcast %29 : f32 to vector<2x128xf32>
    %31 = arith.mulf %1, %30 : vector<2x128xf32>
    %c21 = arith.constant 21 : index
    %32 = memref.load %arg2[%c21] : memref<48xf32, #tpu.memory_space<smem>>
    %33 = vector.broadcast %32 : f32 to vector<2x128xf32>
    %34 = arith.mulf %3, %33 : vector<2x128xf32>
    %35 = arith.addf %31, %34 : vector<2x128xf32>
    %c22 = arith.constant 22 : index
    %36 = memref.load %arg2[%c22] : memref<48xf32, #tpu.memory_space<smem>>
    %37 = vector.broadcast %36 : f32 to vector<2x128xf32>
    %38 = arith.mulf %5, %37 : vector<2x128xf32>
    %39 = arith.addf %35, %38 : vector<2x128xf32>
    %c23 = arith.constant 23 : index
    %40 = memref.load %arg2[%c23] : memref<48xf32, #tpu.memory_space<smem>>
    %41 = vector.broadcast %40 : f32 to vector<2x128xf32>
    %42 = arith.mulf %7, %41 : vector<2x128xf32>
    %43 = arith.addf %39, %42 : vector<2x128xf32>
    %c5 = arith.constant 5 : index
    %44 = memref.load %arg3[%c5] : memref<12xf32, #tpu.memory_space<smem>>
    %45 = vector.broadcast %44 : f32 to vector<2x128xf32>
    %46 = arith.addf %43, %45 : vector<2x128xf32>
    %c0_16 = arith.constant 0 : index
    %c1_17 = arith.constant 1 : index
    %c0_18 = arith.constant 0 : index
    %c0_19 = arith.constant 0 : index
    %47 = vector.load %arg5[%c0_16, %c1_17, %c0_18, %c0_19] : memref<1x4x2x128xf32, #tpu.memory_space<vmem>>, vector<1x1x2x128xf32>
    %48 = vector.shape_cast %47 : vector<1x1x2x128xf32> to vector<2x128xf32>
    %49 = vector.shape_cast %46 : vector<2x128xf32> to vector<1x1x2x128xf32>
    tpu.vector_store %arg5[%c0_16, %c1_17, %c0_18, %c0_19], %49 {strides = array<i32>} : memref<1x4x2x128xf32, #tpu.memory_space<vmem>>, vector<1x1x2x128xf32>,
    %c24 = arith.constant 24 : index
    %50 = memref.load %arg2[%c24] : memref<48xf32, #tpu.memory_space<smem>>
    %51 = vector.broadcast %50 : f32 to vector<2x128xf32>
    %52 = arith.mulf %1, %51 : vector<2x128xf32>
    %c25 = arith.constant 25 : index
    %53 = memref.load %arg2[%c25] : memref<48xf32, #tpu.memory_space<smem>>
    %54 = vector.broadcast %53 : f32 to vector<2x128xf32>
    %55 = arith.mulf %3, %54 : vector<2x128xf32>
    %56 = arith.addf %52, %55 : vector<2x128xf32>
    %c26 = arith.constant 26 : index
    %57 = memref.load %arg2[%c26] : memref<48xf32, #tpu.memory_space<smem>>
    %58 = vector.broadcast %57 : f32 to vector<2x128xf32>
    %59 = arith.mulf %5, %58 : vector<2x128xf32>
    %60 = arith.addf %56, %59 : vector<2x128xf32>
    %c27 = arith.constant 27 : index
    %61 = memref.load %arg2[%c27] : memref<48xf32, #tpu.memory_space<smem>>
    %62 = vector.broadcast %61 : f32 to vector<2x128xf32>
    %63 = arith.mulf %7, %62 : vector<2x128xf32>
    %64 = arith.addf %60, %63 : vector<2x128xf32>
    %c6 = arith.constant 6 : index
    %65 = memref.load %arg3[%c6] : memref<12xf32, #tpu.memory_space<smem>>
    %66 = vector.broadcast %65 : f32 to vector<2x128xf32>
    %67 = arith.addf %64, %66 : vector<2x128xf32>
    %c0_20 = arith.constant 0 : index
    %c2_21 = arith.constant 2 : index
    %c0_22 = arith.constant 0 : index
    %c0_23 = arith.constant 0 : index
    %68 = vector.load %arg5[%c0_20, %c2_21, %c0_22, %c0_23] : memref<1x4x2x128xf32, #tpu.memory_space<vmem>>, vector<1x1x2x128xf32>
    %69 = vector.shape_cast %68 : vector<1x1x2x128xf32> to vector<2x128xf32>
    %70 = vector.shape_cast %67 : vector<2x128xf32> to vector<1x1x2x128xf32>
    tpu.vector_store %arg5[%c0_20, %c2_21, %c0_22, %c0_23], %70 {strides = array<i32>} : memref<1x4x2x128xf32, #tpu.memory_space<vmem>>, vector<1x1x2x128xf32>,
    %c28 = arith.constant 28 : index
    %71 = memref.load %arg2[%c28] : memref<48xf32, #tpu.memory_space<smem>>
    %72 = vector.broadcast %71 : f32 to vector<2x128xf32>
    %73 = arith.mulf %1, %72 : vector<2x128xf32>
    %c29 = arith.constant 29 : index
    %74 = memref.load %arg2[%c29] : memref<48xf32, #tpu.memory_space<smem>>
    %75 = vector.broadcast %74 : f32 to vector<2x128xf32>
    %76 = arith.mulf %3, %75 : vector<2x128xf32>
    %77 = arith.addf %73, %76 : vector<2x128xf32>
    %c30 = arith.constant 30 : index
    %78 = memref.load %arg2[%c30] : memref<48xf32, #tpu.memory_space<smem>>
    %79 = vector.broadcast %78 : f32 to vector<2x128xf32>
    %80 = arith.mulf %5, %79 : vector<2x128xf32>
    %81 = arith.addf %77, %80 : vector<2x128xf32>
    %c31 = arith.constant 31 : index
    %82 = memref.load %arg2[%c31] : memref<48xf32, #tpu.memory_space<smem>>
    %83 = vector.broadcast %82 : f32 to vector<2x128xf32>
    %84 = arith.mulf %7, %83 : vector<2x128xf32>
    %85 = arith.addf %81, %84 : vector<2x128xf32>
    %c7 = arith.constant 7 : index
    %86 = memref.load %arg3[%c7] : memref<12xf32, #tpu.memory_space<smem>>
    %87 = vector.broadcast %86 : f32 to vector<2x128xf32>
    %88 = arith.addf %85, %87 : vector<2x128xf32>
    %c0_24 = arith.constant 0 : index
    %c3_25 = arith.constant 3 : index
    %c0_26 = arith.constant 0 : index
    %c0_27 = arith.constant 0 : index
    %89 = vector.load %arg5[%c0_24, %c3_25, %c0_26, %c0_27] : memref<1x4x2x128xf32, #tpu.memory_space<vmem>>, vector<1x1x2x128xf32>
    %90 = vector.shape_cast %89 : vector<1x1x2x128xf32> to vector<2x128xf32>
    %91 = vector.shape_cast %88 : vector<2x128xf32> to vector<1x1x2x128xf32>
    tpu.vector_store %arg5[%c0_24, %c3_25, %c0_26, %c0_27], %91 {strides = array<i32>} : memref<1x4x2x128xf32, #tpu.memory_space<vmem>>, vector<1x1x2x128xf32>,
    return
  }
  func.func @transform_0(%arg0: i32, %arg1: i32) -> i32 {
    %c0_i32 = arith.constant 0 : i32
    %c0_i32_0 = arith.constant 0 : i32
    return %c0_i32 : i32
  }
  func.func @transform_1(%arg0: i32, %arg1: i32) -> i32 {
    %c0_i32 = arith.constant 0 : i32
    %c0_i32_0 = arith.constant 0 : i32
    return %c0_i32 : i32
  }
  func.func @transform_2(%arg0: i32, %arg1: i32) -> (i32, i32, i32, i32) {
    %c0_i32 = arith.constant 0 : i32
    %c0_i32_0 = arith.constant 0 : i32
    %c0_i32_1 = arith.constant 0 : i32
    return %arg1, %c0_i32, %arg0, %c0_i32_0 : i32, i32, i32, i32
  }
  func.func @transform_3(%arg0: i32, %arg1: i32) -> (i32, i32, i32, i32) {
    %c0_i32 = arith.constant 0 : i32
    %c0_i32_0 = arith.constant 0 : i32
    %c0_i32_1 = arith.constant 0 : i32
    return %arg1, %c0_i32, %arg0, %c0_i32_0 : i32, i32, i32, i32
  }
}

</mosaic_0001>

<llo_original>
// kernel: tpu_custom_call.1
$region0: #{tpu_custom_call.1}
  #allocation0 [shape = 'u32[]', space=smem, size = 0x4, offset = 0x4, fixed_abs, tag = 'smem constant byte address 0x4 - core index']
  #allocation1 [shape = 'u32[144,128]{1,0:T(1,128)}', space=vmem, size = 0x12000, scoped, tag = 'internal scratch']
  %s0 = inlined_call_operand.hbm [shape: f32[48], index: 0, kind: input, shape index: {}]
  %s1 = inlined_call_operand.vmem [shape: f32[12], index: 1, kind: input, shape index: {}]
  %s2 = inlined_call_operand.hbm [shape: f32[2,4,2,128], index: 2, kind: input, shape index: {}]
  %s3 = inlined_call_operand.hbm [shape: f32[2,4,2,128], index: 3, kind: output, shape index: {}]
  %s4 = sld [smem:[#allocation0]]
  $region57: #{tpu_custom_call.1} parent=0
    _
  %s6 = ssub.s32 1, %s4
  %s7 = scalar_select 0, %s6, %s4
  $region1: #{tpu_custom_call.1} parent=0
    #allocation2 [shape = 'u8[512]{0}', space=smem, size = 0x200, scoped, tag = 'input window, operand 0, single buffered']
    #allocation3 [shape = 's32[2]{0}', space=sflag, size = 0x8, scoped, tag = 'scoped memory for tpu_custom_call.1']
    #allocation4 [shape = 's32[2]{0}', space=sflag, size = 0x8, scoped, tag = 'scoped memory for tpu_custom_call.1']
    #allocation5 [shape = 's32[2]{0}', space=sflag, size = 0x8, scoped, tag = 'scoped memory for tpu_custom_call.1']
    #allocation6 [shape = 's32[2]{0}', space=sflag, size = 0x8, scoped, tag = 'scoped memory for tpu_custom_call.1']
    #allocation7 [shape = 'u8[512]{0}', space=smem, size = 0x200, scoped, tag = 'input window, operand 1, single buffered']
    #allocation8 [shape = 'u8[8192]{0}', space=vmem, size = 0x2000, scoped, tag = 'input window, operand 2']
    #allocation9 [shape = 'u8[8192]{0}', space=vmem, size = 0x2000, scoped, tag = 'output window, operand 0']
    %8 = vsyncpa [#allocation5], 0
    %9 = vsyncpa [#allocation6], 0
    %10 = vsyncpa [#allocation3], 0
    %s11 = scalar_lea.sflag [#allocation3], 1
    %12 = vsyncpa %s11, 0
    %13 = vsyncpa [#allocation4], 0
    %s14 = scalar_lea.sflag [#allocation4], 1
    %15 = vsyncpa %s14, 0
    loop: start=0, step=1, limit=4
    $region2: #{tpu_custom_call.1} parent=1 // loop_pre_header
      _
    $region3: #{tpu_custom_call.1} parent=1 // loop_header
      %s17 = sphi 0, %s21
      %p18 = scmp.ge.s32.totalorder %s17, 4
      %s24 = sphi 0, %s36
      %s25 = sphi 0, %s32
      %s26 = sphi 0, %s24
      %s27 = sphi 0, %s25
      %s28 = sphi 0, %s26
      %s29 = sphi 0, %s27
      %s37 = sphi 0, %s37
      %s39 = sphi 0, %s37
      %s40 = sphi 0, %s39
      %s54 = sphi 0, %s40
      %s58 = sphi 0, %s58
      %s60 = sphi 0, %s58
      %s61 = sphi 0, %s60
      %s75 = sphi 0, %s61
      %s83 = sphi 0, %s85
      %s86 = sphi 0, %s83
      %s87 = sphi 0, %s86
      %s103 = sphi 0, %s87
      %s111 = sphi 0, %s113
      %s114 = sphi 0, %s111
      %s115 = sphi 0, %s114
      %s131 = sphi 0, %s115
    $region4: #{tpu_custom_call.1} parent=1 // loop_header_branch
      %20 = sbr.rel (%p18) target = $region8
    $region5: #{tpu_custom_call.1} parent=1 // loop_body
      %s22 = ssub.s32 %s17, 1
      %s23 = ssub.s32 %s17, 2
      %s30 = sadd.s32 1, %s25
      %p31 = scmp.ge.s32.totalorder %s30, 2
      %s32 = scalar_select %p31, 0, %s30
      %s33 = sadd.s32 1, %s24
      %s34 = scalar_select %p31, %s33, %s24
      %p35 = scmp.ge.s32.totalorder %s34, 1
      %s36 = scalar_select %p35, 0, %s34
      %s38 = sadd.s32 %s37, 1
      %p41 = scmp.eq.s32.totalorder %s17, 1
      %p42 = scmp.ne.s32.totalorder %s37, %s39
      %p43 = scmp.eq.s32.totalorder %s17, 0
      %p44 = por %p42, %p43
      %p45 = scmp.ne.s32.totalorder %s37, %s39
      %p46 = scmp.eq.s32.totalorder %s22, 1
      %p47 = por %p45, %p46
      %p48 = scmp.ne.s32.totalorder %s39, %s40
      %p49 = scmp.eq.s32.totalorder %s22, 0
      %p50 = por %p48, %p49
      %p51 = scmp.ne.s32.totalorder %s39, %s40
      %p52 = scmp.eq.s32.totalorder %s23, 1
      %p53 = por %p51, %p52
      %p55 = scmp.ne.s32.totalorder %s40, %s54
      %p56 = scmp.eq.s32.totalorder %s23, 0
      %p57 = por %p55, %p56
      %s59 = sadd.s32 %s58, 1
      %p62 = scmp.eq.s32.totalorder %s17, 1
      %p63 = scmp.ne.s32.totalorder %s58, %s60
      %p64 = scmp.eq.s32.totalorder %s17, 0
      %p65 = por %p63, %p64
      %p66 = scmp.ne.s32.totalorder %s58, %s60
      %p67 = scmp.eq.s32.totalorder %s22, 1
      %p68 = por %p66, %p67
      %p69 = scmp.ne.s32.totalorder %s60, %s61
      %p70 = scmp.eq.s32.totalorder %s22, 0
      %p71 = por %p69, %p70
      %p72 = scmp.ne.s32.totalorder %s60, %s61
      %p73 = scmp.eq.s32.totalorder %s23, 1
      %p74 = por %p72, %p73
      %p76 = scmp.ne.s32.totalorder %s61, %s75
      %p77 = scmp.eq.s32.totalorder %s23, 0
      %p78 = por %p76, %p77
      %s79 = ssub.s32 %s25, %s32
      %s80 = ssub.s32 %s24, %s36
      %s81 = sor.u32 %s79, %s80
      %p82 = scmp.eq.s32.totalorder %s81, 0
      %s84 = sadd.s32 %s83, 1
      %s85 = scalar_select %p82, %s83, %s84
      %p88 = pneg %p82
      %p89 = scmp.eq.s32.totalorder %s17, 1
      %p90 = por %p88, %p89
      %p91 = scmp.ne.s32.totalorder %s83, %s86
      %p92 = scmp.eq.s32.totalorder %s17, 0
      %p93 = por %p91, %p92
      %p94 = scmp.ne.s32.totalorder %s83, %s86
      %p95 = scmp.eq.s32.totalorder %s22, 1
      %p96 = por %p94, %p95
      %p97 = scmp.ne.s32.totalorder %s86, %s87
      %p98 = scmp.eq.s32.totalorder %s22, 0
      %p99 = por %p97, %p98
      %p100 = scmp.ne.s32.totalorder %s86, %s87
      %p101 = scmp.eq.s32.totalorder %s23, 1
      %p102 = por %p100, %p101
      %p104 = scmp.ne.s32.totalorder %s87, %s103
      %p105 = scmp.eq.s32.totalorder %s23, 0
      %p106 = por %p104, %p105
      %s107 = ssub.s32 %s25, %s32
      %s108 = ssub.s32 %s24, %s36
      %s109 = sor.u32 %s107, %s108
      %p110 = scmp.eq.s32.totalorder %s109, 0
      %s112 = sadd.s32 %s111, 1
      %s113 = scalar_select %p110, %s111, %s112
      %p116 = pneg %p110
      %p117 = scmp.eq.s32.totalorder %s17, 1
      %p118 = por %p116, %p117
      %p119 = scmp.ne.s32.totalorder %s111, %s114
      %p120 = scmp.eq.s32.totalorder %s17, 0
      %p121 = por %p119, %p120
      %p122 = scmp.ne.s32.totalorder %s111, %s114
      %p123 = scmp.eq.s32.totalorder %s22, 1
      %p124 = por %p122, %p123
      %p125 = scmp.ne.s32.totalorder %s114, %s115
      %p126 = scmp.eq.s32.totalorder %s22, 0
      %p127 = por %p125, %p126
      %p128 = scmp.ne.s32.totalorder %s114, %s115
      %p129 = scmp.eq.s32.totalorder %s23, 1
      %p130 = por %p128, %p129
      %p132 = scmp.ne.s32.totalorder %s115, %s131
      %p133 = scmp.eq.s32.totalorder %s23, 0
      %p134 = por %p132, %p133
      %p135 = scmp.le.s32.totalorder 1, %s17
      %p136 = scmp.lt.s32.totalorder %s17, 3
      %p137 = pnand %p135, %p136
      %p138 = pneg %p137
      // Predicated region
      $region9: #{tpu_custom_call.1} parent=5 // pred_check
        _
      $region10: #{tpu_custom_call.1} parent=5 // pred_check_branch
        %140 = sbr.rel (%p137) target = $region12
      $region11: #{tpu_custom_call.1} parent=5 // pred_region
        %s141 = ssub.s32 %s17, 1
        // Predicated region
        $region13: #{tpu_custom_call.1} parent=11 // pred_check
          %p142 = pneg %p50
        $region14: #{tpu_custom_call.1} parent=11 // pred_check_branch
          %144 = sbr.rel (%p142) target = $region16
        $region15: #{tpu_custom_call.1} parent=11 // pred_region
          %s146 = ssub.s32 16, 16
          %147 = vsyncadd [#allocation5], %s146
          %150 = dma.hbm_to_smem %s0, 16, [#allocation2], [#allocation5]
        $region16: #{tpu_custom_call.1} parent=11 // pred_fallthru
          _
        // Predicated region
        $region17: #{tpu_custom_call.1} parent=11 // pred_check
          %p151 = pneg %p71
        $region18: #{tpu_custom_call.1} parent=11 // pred_check_branch
          %153 = sbr.rel (%p151) target = $region20
        $region19: #{tpu_custom_call.1} parent=11 // pred_region
          %s155 = ssub.s32 16, 16
          %156 = vsyncadd [#allocation6], %s155
          %s158 = sshll.u32 %s1, 4
          %s159 = int_to_ptr.vmem [resolvable:$true] %s158
          %161 = dma.vmem_to_smem %s159, 16, [#allocation7], [#allocation6]
        $region20: #{tpu_custom_call.1} parent=11 // pred_fallthru
          _
      $region12: #{tpu_custom_call.1} parent=5 // pred_fallthru
        _
      %p162 = scmp.lt.s32.totalorder %s17, 2
      // Predicated region
      $region21: #{tpu_custom_call.1} parent=5 // pred_check
        %p163 = pneg %p162
      $region22: #{tpu_custom_call.1} parent=5 // pred_check_branch
        %165 = sbr.rel (%p163) target = $region24
      $region23: #{tpu_custom_call.1} parent=5 // pred_region
        // Predicated region
        $region25: #{tpu_custom_call.1} parent=23 // pred_check
          %p166 = pneg %p93
        $region26: #{tpu_custom_call.1} parent=23 // pred_check_branch
          %168 = sbr.rel (%p166) target = $region28
        $region27: #{tpu_custom_call.1} parent=23 // pred_region
          %s169 = sand.u32 %s83, 1
          %s170 = scalar_lea.sflag [#allocation3], %s169
          %s171 = sand.u32 %s83, 1
          %s172 = smul.addr %s171, 8
          %s173 = scalar_lea.vmem [#allocation8], %s172
          %s175 = ssub.s32 128, 128
          %176 = vsyncadd %s170, %s175
          %s177 = smul.addr %s25, 4
          %s178 = sadd.s32 %s24, %s177
          %s179 = smul.addr %s178, 32
          %s180 = scalar_lea.hbm %s2, %s179
          %s181 = sshll.u32 %s173, 4
          %s182 = int_to_ptr.vmem [resolvable:$true] %s181
          %187 = dma.hbm_to_vmem [thread:$0]  %s180, 128, %s182, %s170, 32, 32, 2
        $region28: #{tpu_custom_call.1} parent=23 // pred_fallthru
          _
      $region24: #{tpu_custom_call.1} parent=5 // pred_fallthru
        _
      %p188 = scmp.le.s32.totalorder 1, %s17
      %p189 = scmp.lt.s32.totalorder %s17, 3
      %p190 = pnand %p188, %p189
      %p191 = pneg %p190
      // Predicated region
      $region29: #{tpu_custom_call.1} parent=5 // pred_check
        _
      $region30: #{tpu_custom_call.1} parent=5 // pred_check_branch
        %193 = sbr.rel (%p190) target = $region32
      $region31: #{tpu_custom_call.1} parent=5 // pred_region
        %s194 = ssub.s32 %s17, 1
        // Predicated region
        $region33: #{tpu_custom_call.1} parent=31 // pred_check
          %p195 = pneg %p50
        $region34: #{tpu_custom_call.1} parent=31 // pred_check_branch
          %197 = sbr.rel (%p195) target = $region36
        $region35: #{tpu_custom_call.1} parent=31 // pred_region
          %198 = dma.done [#allocation5], 16
        $region36: #{tpu_custom_call.1} parent=31 // pred_fallthru
          _
        // Predicated region
        $region37: #{tpu_custom_call.1} parent=31 // pred_check
          %p199 = pneg %p71
        $region38: #{tpu_custom_call.1} parent=31 // pred_check_branch
          %201 = sbr.rel (%p199) target = $region40
        $region39: #{tpu_custom_call.1} parent=31 // pred_region
          %202 = dma.done [#allocation6], 16
        $region40: #{tpu_custom_call.1} parent=31 // pred_fallthru
          _
        %s203 = sand.u32 %s86, 1
        %s204 = scalar_lea.sflag [#allocation3], %s203
        %s205 = sand.u32 %s86, 1
        %s206 = smul.addr %s205, 8
        %s207 = scalar_lea.vmem [#allocation8], %s206
        // Predicated region
        $region41: #{tpu_custom_call.1} parent=31 // pred_check
          %p208 = pneg %p99
        $region42: #{tpu_custom_call.1} parent=31 // pred_check_branch
          %210 = sbr.rel (%p208) target = $region44
        $region43: #{tpu_custom_call.1} parent=31 // pred_region
          %211 = dma.done %s204, 128
        $region44: #{tpu_custom_call.1} parent=31 // pred_fallthru
          _
        %212 = sfence
        %p213 = pneg %p50
        %p214 = pneg %p47
        %p215 = pneg %p71
        %p216 = pneg %p68
        %s217 = sand.u32 %s86, 1
        %s218 = scalar_lea.sflag [#allocation3], %s217
        %s219 = sand.u32 %s86, 1
        %s220 = smul.addr %s219, 8
        %s221 = scalar_lea.vmem [#allocation8], %s220
        %p222 = pneg %p99
        %p223 = pneg %p96
        %p224 = pneg %p127
        %p225 = pneg %p124
        %s226 = sand.u32 %s114, 1
        %s227 = scalar_lea.sflag [#allocation4], %s226
        %s228 = sand.u32 %s114, 1
        %s229 = smul.addr %s228, 8
        %s230 = scalar_lea.vmem [#allocation9], %s229
        %v231 = vld [vmem:[%s207] sm:$0x3]
        %s232 = scalar_lea.vmem %s207, 2 [#allocation8]
        %v233 = vld [vmem:[%s232] sm:$0x3]
        %s234 = scalar_lea.vmem %s207, 4 [#allocation8]
        %v235 = vld [vmem:[%s234] sm:$0x3]
        %s236 = scalar_lea.vmem %s207, 6 [#allocation8]
        %v237 = vld [vmem:[%s236] sm:$0x3]
        %s238 = sld [smem:[#allocation2 + $0x10]]
        %v239 = vstv %s238
        %v240 = vmul.f32 %v231, %v239
        %s241 = sld [smem:[#allocation2 + $0x11]]
        %v242 = vstv %s241
        %v243 = vmul.f32 %v233, %v242
        %v244 = vadd.f32 %v240, %v243
        %s245 = sld [smem:[#allocation2 + $0x12]]
        %v246 = vstv %s245
        %v247 = vmul.f32 %v235, %v246
        %v248 = vadd.f32 %v244, %v247
        %s249 = sld [smem:[#allocation2 + $0x13]]
        %v250 = vstv %s249
        %v251 = vmul.f32 %v237, %v250
        %v252 = vadd.f32 %v248, %v251
        %s253 = sld [smem:[#allocation7 + $0x4]]
        %v254 = vstv %s253
        %v255 = vadd.f32 %v252, %v254
        %256 = vst [vmem:[%s230] sm:$0x3] %v255
        %s257 = sld [smem:[#allocation2 + $0x14]]
        %v258 = vstv %s257
        %v259 = vmul.f32 %v231, %v258
        %s260 = sld [smem:[#allocation2 + $0x15]]
        %v261 = vstv %s260
        %v262 = vmul.f32 %v233, %v261
        %v263 = vadd.f32 %v259, %v262
        %s264 = sld [smem:[#allocation2 + $0x16]]
        %v265 = vstv %s264
        %v266 = vmul.f32 %v235, %v265
        %v267 = vadd.f32 %v263, %v266
        %s268 = sld [smem:[#allocation2 + $0x17]]
        %v269 = vstv %s268
        %v270 = vmul.f32 %v237, %v269
        %v271 = vadd.f32 %v267, %v270
        %s272 = sld [smem:[#allocation7 + $0x5]]
        %v273 = vstv %s272
        %v274 = vadd.f32 %v271, %v273
        %s275 = scalar_lea.vmem %s230, 2 [#allocation9]
        %276 = vst [vmem:[%s275] sm:$0x3] %v274
        %s277 = sld [smem:[#allocation2 + $0x18]]
        %v278 = vstv %s277
        %v279 = vmul.f32 %v231, %v278
        %s280 = sld [smem:[#allocation2 + $0x19]]
        %v281 = vstv %s280
        %v282 = vmul.f32 %v233, %v281
        %v283 = vadd.f32 %v279, %v282
        %s284 = sld [smem:[#allocation2 + $0x1a]]
        %v285 = vstv %s284
        %v286 = vmul.f32 %v235, %v285
        %v287 = vadd.f32 %v283, %v286
        %s288 = sld [smem:[#allocation2 + $0x1b]]
        %v289 = vstv %s288
        %v290 = vmul.f32 %v237, %v289
        %v291 = vadd.f32 %v287, %v290
        %s292 = sld [smem:[#allocation7 + $0x6]]
        %v293 = vstv %s292
        %v294 = vadd.f32 %v291, %v293
        %s295 = scalar_lea.vmem %s230, 4 [#allocation9]
        %296 = vst [vmem:[%s295] sm:$0x3] %v294
        %s297 = sld [smem:[#allocation2 + $0x1c]]
        %v298 = vstv %s297
        %v299 = vmul.f32 %v231, %v298
        %s300 = sld [smem:[#allocation2 + $0x1d]]
        %v301 = vstv %s300
        %v302 = vmul.f32 %v233, %v301
        %v303 = vadd.f32 %v299, %v302
        %s304 = sld [smem:[#allocation2 + $0x1e]]
        %v305 = vstv %s304
        %v306 = vmul.f32 %v235, %v305
        %v307 = vadd.f32 %v303, %v306
        %s308 = sld [smem:[#allocation2 + $0x1f]]
        %v309 = vstv %s308
        %v310 = vmul.f32 %v237, %v309
        %v311 = vadd.f32 %v307, %v310
        %s312 = sld [smem:[#allocation7 + $0x7]]
        %v313 = vstv %s312
        %v314 = vadd.f32 %v311, %v313
        %s315 = scalar_lea.vmem %s230, 6 [#allocation9]
        %316 = vst [vmem:[%s315] sm:$0x3] %v314
        %s317 = sand.u32 %s114, 1
        %s318 = scalar_lea.sflag [#allocation4], %s317
        %s319 = sand.u32 %s114, 1
        %s320 = smul.addr %s319, 8
        %s321 = scalar_lea.vmem [#allocation9], %s320
        // Predicated region
        $region45: #{tpu_custom_call.1} parent=31 // pred_check
          %p322 = pneg %p124
        $region46: #{tpu_custom_call.1} parent=31 // pred_check_branch
          %324 = sbr.rel (%p322) target = $region48
        $region47: #{tpu_custom_call.1} parent=31 // pred_region
          %s326 = ssub.s32 128, 128
          %327 = vsyncadd %s318, %s326
          %s328 = smul.addr %s27, 4
          %s329 = sadd.s32 %s26, %s328
          %s330 = smul.addr %s329, 32
          %s331 = scalar_lea.hbm %s3, %s330
          %s332 = sshll.u32 %s321, 4
          %s333 = int_to_ptr.vmem [resolvable:$true] %s332
          %338 = dma.vmem_to_hbm [thread:$0]  %s333, 128, %s331, %s318, 32, 32, 2
        $region48: #{tpu_custom_call.1} parent=31 // pred_fallthru
          _
      $region32: #{tpu_custom_call.1} parent=5 // pred_fallthru
        _
      %p339 = scmp.le.s32.totalorder 2, %s17
      // Predicated region
      $region49: #{tpu_custom_call.1} parent=5 // pred_check
        %p340 = pneg %p339
      $region50: #{tpu_custom_call.1} parent=5 // pred_check_branch
        %342 = sbr.rel (%p340) target = $region52
      $region51: #{tpu_custom_call.1} parent=5 // pred_region
        %s343 = ssub.s32 %s17, 2
        // Predicated region
        $region53: #{tpu_custom_call.1} parent=51 // pred_check
          %p344 = pneg %p130
        $region54: #{tpu_custom_call.1} parent=51 // pred_check_branch
          %346 = sbr.rel (%p344) target = $region56
        $region55: #{tpu_custom_call.1} parent=51 // pred_region
          %s347 = sand.u32 %s115, 1
          %s348 = scalar_lea.sflag [#allocation4], %s347
          %s349 = sand.u32 %s115, 1
          %s350 = smul.addr %s349, 8
          %s351 = scalar_lea.vmem [#allocation9], %s350
          %352 = dma.done %s348, 128
        $region56: #{tpu_custom_call.1} parent=51 // pred_fallthru
          _
      $region52: #{tpu_custom_call.1} parent=5 // pred_fallthru
        _
    $region6: #{tpu_custom_call.1} parent=1 // loop_footer
      %s21 = sadd.s32 1, %s17
    $region7: #{tpu_custom_call.1} parent=1 // loop_footer_branch
      %16 = sbr.rel target = $region3
    $region8: #{tpu_custom_call.1} parent=1 // loop_exit
      _
    %353 = vsyncpa [#allocation3], 1
    %s354 = scalar_lea.sflag [#allocation3], 1
    %355 = vsyncpa %s354, 1
    %356 = vsyncpa [#allocation4], 1
    %s357 = scalar_lea.sflag [#allocation4], 1
    %358 = vsyncpa %s357, 1
    %359 = vsyncpa [#allocation5], 1
    %s360 = scalar_lea.sflag [#allocation5], 1
    %361 = vsyncpa %s360, 1
    %362 = vsyncpa [#allocation6], 1
    %s363 = scalar_lea.sflag [#allocation6], 1
    %364 = vsyncpa %s363, 1

</llo_original>
